<compile_context>
chip_gen: v7x
topology: tpu7x:2x2x1
jax: 0.10.0
libtpu: 0.0.40
codegen_flags: <defaults>
</compile_context>

<pallas_src>
import math
import functools

import jax
import jax.numpy as jnp
from jax import lax
from jax.experimental import pallas as pl
from jax.experimental.pallas import tpu as pltpu


# --------------------------- per-generation knobs --------------------------- #

def _device_kind() -> str:
    try:
        return jax.devices()[0].device_kind.lower()
    except Exception:
        return ""


_KIND = _device_kind()
_IS_V7 = ("v7" in _KIND) or ("7x" in _KIND)
_IS_V5E = ("v5e" in _KIND) or ("v5 lite" in _KIND) or ("v5lite" in _KIND)

# v7x: 64 MiB physical VMEM per TensorCore; v5e/v6e: 128 MiB.
_VMEM_LIMIT = (48 if _IS_V7 else 96) * 1024 * 1024
# MXU native tile: 256 on v6e/v7x, 128 on v5e.
_LANE_ALIGNS = (128,) if _IS_V5E else (256, 128)
# Sublane alignment: 16 for packed bf16 rows (falls back to 8).
_SUBLANE_ALIGNS = (256, 128, 16, 8)
if _IS_V7 or _IS_V5E:
    _MM_TILE_PREFS = (256, 256, 512)      # (tm, tn, tk)
else:
    _MM_TILE_PREFS = (512, 512, 1024)
_KV_TILE_PREF = 512 if _IS_V7 else 1024   # smaller KV tiles on v7x (less VMEM)
_Q_TILE_PREF = 256


def _pick_tile(dim, pref, aligns):
    """Largest aligned tile <= pref that evenly divides dim, else the full dim."""
    if dim <= pref:
        return dim
    for a in aligns:
        t = (min(pref, dim) // a) * a
        while t >= a:
            if dim % t == 0:
                return t
            t -= a
    return dim


# ----------------------------- tiled matmul kernel -------------------------- #

def _matmul_kernel(x_ref, w_ref, o_ref, acc_ref):
    @pl.when(pl.program_id(2) == 0)
    def _():
        acc_ref[...] = jnp.zeros_like(acc_ref)

    # Cast the LHS block to the (bf16) weight dtype so the MXU runs its fast
    # path; accumulate in f32.
    acc_ref[...] += jnp.dot(x_ref[...].astype(w_ref.dtype), w_ref[...],
                            preferred_element_type=jnp.float32)

    @pl.when(pl.program_id(2) == pl.num_programs(2) - 1)
    def _():
        o_ref[...] = acc_ref[...].astype(o_ref.dtype)


def pallas_matmul(x, w, out_dtype=None):
    """x: (M, K), w: (K, N) -> (M, N).  bf16 MXU operands, f32 accumulator."""
    M, K = x.shape
    K2, N = w.shape
    assert K == K2
    out_dtype = x.dtype if out_dtype is None else out_dtype
    tm_p, tn_p, tk_p = _MM_TILE_PREFS
    tm = _pick_tile(M, tm_p, _SUBLANE_ALIGNS)
    tn = _pick_tile(N, tn_p, _LANE_ALIGNS)
    tk = _pick_tile(K, tk_p, _LANE_ALIGNS)
    grid = (M // tm, N // tn, K // tk)
    return pl.pallas_call(
        _matmul_kernel,
        out_shape=jax.ShapeDtypeStruct((M, N), out_dtype),
        grid=grid,
        in_specs=[
            pl.BlockSpec((tm, tk), lambda i, j, k: (i, k)),
            pl.BlockSpec((tk, tn), lambda i, j, k: (k, j)),
        ],
        out_specs=pl.BlockSpec((tm, tn), lambda i, j, k: (i, j)),
        scratch_shapes=[pltpu.VMEM((tm, tn), jnp.float32)],
        compiler_params=pltpu.CompilerParams(
            dimension_semantics=("parallel", "parallel", "arbitrary"),
            vmem_limit_bytes=_VMEM_LIMIT),
    )(x, w)


# ------------------------ flash attention (GQA, tiled) ----------------------- #

def _flash_attn_kernel(q_ref, k_ref, v_ref, o_ref, m_ref, l_ref, acc_ref,
                       *, n_rep):
    # q_ref: (1, Hq, tq, D) bf16      k_ref / v_ref: (1, Hkv, tkv, D) bf16
    # o_ref: (1, tq, Hq*D)            scratch: m/l (Hkv, n_rep*tq, 1) f32,
    #                                           acc (Hkv, n_rep*tq, D) f32
    ki = pl.program_id(2)
    _, Hq, tq, D = q_ref.shape
    Hkv = Hq // n_rep

    @pl.when(ki == 0)
    def _():
        m_ref[...] = jnp.full_like(m_ref, -jnp.inf)
        l_ref[...] = jnp.zeros_like(l_ref)
        acc_ref[...] = jnp.zeros_like(acc_ref)

    # Group query heads by their KV head (GQA) — pure reshape, no relayout,
    # no jnp.repeat / HBM duplication of K/V.  Scale is already folded into wq.
    q = q_ref[0].reshape(Hkv, n_rep * tq, D)            # bf16
    k = k_ref[0]                                        # (Hkv, tkv, D) bf16
    v = v_ref[0]

    # Scores: batched contraction over D (no explicit transpose), f32 result.
    s = lax.dot_general(q, k, (((2,), (2,)), ((0,), (0,))),
                        preferred_element_type=jnp.float32)     # (Hkv, nS, tkv)

    # Online softmax — all statistics in f32 (VPU/EUP f32 path; safe on v5e).
    m_prev = m_ref[...]
    m_new = jnp.maximum(m_prev, jnp.max(s, axis=-1, keepdims=True))
    alpha = jnp.exp(m_prev - m_new)
    p = jnp.exp(s - m_new)
    l_ref[...] = alpha * l_ref[...] + jnp.sum(p, axis=-1, keepdims=True)
    pv = lax.dot_general(p.astype(v.dtype), v, (((2,), (1,)), ((0,), (0,))),
                         preferred_element_type=jnp.float32)    # (Hkv, nS, D)
    acc_ref[...] = alpha * acc_ref[...] + pv
    m_ref[...] = m_new

    @pl.when(ki == pl.num_programs(2) - 1)
    def _():
        out = acc_ref[...] / l_ref[...]                 # exact softmax divide
        # Head-by-head static stores into the lane-dense (tq, Hq*D) output
        # block.  At real head_dim=128 these are 128-aligned unmasked stores;
        # a fully merged slab store would need an in-kernel transpose.
        for kvh in range(Hkv):
            for r in range(n_rep):
                h = kvh * n_rep + r
                o_ref[0, :, h * D:(h + 1) * D] = (
                    out[kvh, r * tq:(r + 1) * tq, :].astype(o_ref.dtype))


def pallas_flash_attention(q, k_cache, v_cache, *, n_rep, kv_len):
    """q: (B, Hq, S, D) bf16 (scale pre-folded); caches: (maxB, Hkv, maxS, D) bf16.

    Attends to cache positions [0, kv_len) and returns (B, S, Hq*D) bf16.
    Grid = (batch, q_tiles, kv_tiles): batch and q-tiles are megacore-parallel,
    the KV axis streams with online softmax (bounded VMEM, no (S, L) scores).
    NOTE: no causal mask — matches the reference PyTorch module.
    """
    B, Hq, S, D = q.shape
    _, Hkv, max_seq, _ = k_cache.shape
    assert Hq == Hkv * n_rep and kv_len <= max_seq
    tq = _pick_tile(S, _Q_TILE_PREF, (128, 16, 8))
    tkv = _pick_tile(kv_len, _KV_TILE_PREF, _LANE_ALIGNS + (8,))
    grid = (B, S // tq, kv_len // tkv)
    kernel = functools.partial(_flash_attn_kernel, n_rep=n_rep)
    # TODO(synk): if DMA is still exposed on v7x at bf16/tkv=512, deepen the K/V
    # pipelines with pipeline_mode=pl.Buffered(3) instead of growing tkv.
    return pl.pallas_call(
        kernel,
        out_shape=jax.ShapeDtypeStruct((B, S, Hq * D), q.dtype),
        grid=grid,
        in_specs=[
            pl.BlockSpec((1, Hq, tq, D), lambda b, qi, ki: (b, 0, qi, 0)),
            # K/V stream straight from the full cache arrays (grid stops at
            # kv_len, so no wrapper-side cache slice / copy is needed).
            pl.BlockSpec((1, Hkv, tkv, D), lambda b, qi, ki: (b, 0, ki, 0)),
            pl.BlockSpec((1, Hkv, tkv, D), lambda b, qi, ki: (b, 0, ki, 0)),
        ],
        out_specs=pl.BlockSpec((1, tq, Hq * D), lambda b, qi, ki: (b, qi, 0)),
        scratch_shapes=[
            pltpu.VMEM((Hkv, n_rep * tq, 1), jnp.float32),   # m
            pltpu.VMEM((Hkv, n_rep * tq, 1), jnp.float32),   # l
            pltpu.VMEM((Hkv, n_rep * tq, D), jnp.float32),   # acc
        ],
        compiler_params=pltpu.CompilerParams(
            dimension_semantics=("parallel", "parallel", "arbitrary"),
            vmem_limit_bytes=_VMEM_LIMIT),
    )(q, k_cache, v_cache)


# -------------------- in-place (aliased) KV-cache writeback ------------------ #

def _kv_writeback_kernel(k_new_ref, v_new_ref, k_cache_in, v_cache_in,
                         k_cache_out, v_cache_out, sem, *, start_pos):
    # k_new/v_new: (Hkv, S, D) VMEM blocks (head-major, RoPE already applied).
    # caches: full (max_batch, Hkv, max_seq, D) HBM refs, aliased in/out, so
    # only the new-token slice is DMA'd — no full-cache copy per step.
    del k_cache_in, v_cache_in          # aliased with the outputs
    b = pl.program_id(0)
    S = k_new_ref.shape[1]
    ck = pltpu.make_async_copy(
        k_new_ref, k_cache_out.at[b, :, pl.ds(start_pos, S), :], sem.at[0])
    cv = pltpu.make_async_copy(
        v_new_ref, v_cache_out.at[b, :, pl.ds(start_pos, S), :], sem.at[1])
    ck.start()
    cv.start()
    ck.wait()
    cv.wait()


def pallas_kv_cache_update(k_new, v_new, cache_k, cache_v, start_pos):
    """Scatter new head-major K/V (B, Hkv, S, D) into the caches in place."""
    B, Hkv, S, D = k_new.shape
    kernel = functools.partial(_kv_writeback_kernel, start_pos=start_pos)
    return pl.pallas_call(
        kernel,
        out_shape=(jax.ShapeDtypeStruct(cache_k.shape, cache_k.dtype),
                   jax.ShapeDtypeStruct(cache_v.shape, cache_v.dtype)),
        grid=(B,),
        in_specs=[
            pl.BlockSpec((None, Hkv, S, D), lambda b: (b, 0, 0, 0)),
            pl.BlockSpec((None, Hkv, S, D), lambda b: (b, 0, 0, 0)),
            pl.BlockSpec(memory_space=pl.ANY),
            pl.BlockSpec(memory_space=pl.ANY),
        ],
        out_specs=(pl.BlockSpec(memory_space=pl.ANY),
                   pl.BlockSpec(memory_space=pl.ANY)),
        scratch_shapes=[pltpu.SemaphoreType.DMA((2,))],
        input_output_aliases={2: 0, 3: 1},
        compiler_params=pltpu.CompilerParams(
            dimension_semantics=("arbitrary",),
            vmem_limit_bytes=_VMEM_LIMIT,
            has_side_effects=True),
    )(k_new, v_new, cache_k, cache_v)


# --------------------------------- JAX glue --------------------------------- #

def apply_rotary_embeddings(x, cos, sin):
    """x: (B, S, H, D); cos/sin: (S, D//2). Complex multiply on (even, odd) pairs,
    computed in f32 and cast back to x.dtype (matches torch.view_as_complex)."""
    # TODO(synk): fuse RoPE + the head-major transpose into the QKV projection
    # epilogue (pltpu.roll on the XLU) to remove this extra activation pass.
    B, S, H, D = x.shape
    xr = x.astype(jnp.float32).reshape(B, S, H, D // 2, 2)
    x_re, x_im = xr[..., 0], xr[..., 1]
    c = cos[None, :, None, :]
    s = sin[None, :, None, :]
    o_re = x_re * c - x_im * s
    o_im = x_re * s + x_im * c
    out = jnp.stack([o_re, o_im], axis=-1).reshape(B, S, H, D)
    return out.astype(x.dtype)


def precompute_freqs(head_dim, seq_len, start_pos, theta=10000.0):
    inv = 1.0 / (theta ** (jnp.arange(0, head_dim, 2, dtype=jnp.float32) / head_dim))
    t = jnp.arange(start_pos, start_pos + seq_len, dtype=jnp.float32)
    freqs = jnp.outer(t, inv)                   # (S, D//2)
    return jnp.cos(freqs), jnp.sin(freqs)


class SelfAttentionPallas:
    """JAX/Pallas port of the PyTorch SelfAttention module (LLaMA-style)."""

    def __init__(self, key, dim, n_heads, n_kv_heads, max_batch_size, max_seq_len,
                 param_dtype=jnp.bfloat16):
        self.n_kv_heads = n_heads if n_kv_heads is None else n_kv_heads
        self.n_heads_q = n_heads
        self.n_rep = self.n_heads_q // self.n_kv_heads
        self.head_dim = dim // n_heads

        k1, k2, k3, k4 = jax.random.split(key, 4)
        init = 1.0 / math.sqrt(dim)
        wq = jax.random.normal(k1, (dim, n_heads * self.head_dim), jnp.float32) * init
        wk = jax.random.normal(k2, (dim, self.n_kv_heads * self.head_dim), jnp.float32) * init
        wv = jax.random.normal(k3, (dim, self.n_kv_heads * self.head_dim), jnp.float32) * init
        wo = jax.random.normal(k4, (n_heads * self.head_dim, dim), jnp.float32) * init
        # Fold the 1/sqrt(head_dim) attention scale into wq (RoPE is a rotation,
        # so the scale commutes) — no per-KV-tile multiply in the flash kernel.
        wq = wq * (1.0 / math.sqrt(self.head_dim))
        # Fused bf16 QKV weight: one projection kernel, bf16 MXU fast path.
        self.wqkv = jnp.concatenate([wq, wk, wv], axis=1).astype(param_dtype)
        self.wo = wo.astype(param_dtype)

        # Head-major bf16 KV cache: (max_batch, n_kv_heads, max_seq, head_dim).
        self.cache_k = jnp.zeros(
            (max_batch_size, self.n_kv_heads, max_seq_len, self.head_dim), param_dtype)
        self.cache_v = jnp.zeros_like(self.cache_k)

    def __call__(self, x, start_pos, cos, sin):
        B, S, dim = x.shape
        Hq, Hkv, D = self.n_heads_q, self.n_kv_heads, self.head_dim
        x2d = x.reshape(B * S, dim)

        # Fused QKV projection (bf16 MXU, f32 accumulation) -> bf16 activations.
        qkv = pallas_matmul(x2d, self.wqkv, out_dtype=self.wqkv.dtype)
        q_end = Hq * D
        k_end = q_end + Hkv * D
        xq = qkv[:, :q_end].reshape(B, S, Hq, D)
        xk = qkv[:, q_end:k_end].reshape(B, S, Hkv, D)
        xv = qkv[:, k_end:].reshape(B, S, Hkv, D)

        # Rotary embeddings on the new tokens only (f32 math, bf16 out).
        xq = apply_rotary_embeddings(xq, cos, sin)
        xk = apply_rotary_embeddings(xk, cos, sin)

        # New-token K/V to cache layout (cheap: new tokens only), then in-place
        # aliased writeback — no full functional cache copy per call.
        xk_hm = xk.transpose(0, 2, 1, 3)        # (B, Hkv, S, D)
        xv_hm = xv.transpose(0, 2, 1, 3)
        self.cache_k, self.cache_v = pallas_kv_cache_update(
            xk_hm, xv_hm, self.cache_k, self.cache_v, start_pos)

        q_hm = xq.transpose(0, 2, 1, 3)         # (B, Hq, S, D)
        kv_len = start_pos + S

        # Flash attention streams K/V straight from the caches up to kv_len.
        attn = pallas_flash_attention(q_hm, self.cache_k, self.cache_v,
                                      n_rep=self.n_rep, kv_len=kv_len)
        # attn is already lane-dense (B, S, Hq*D); the reshape is free.
        out2d = attn.reshape(B * S, Hq * D)
        return pallas_matmul(out2d, self.wo, out_dtype=x.dtype).reshape(B, S, dim)


# ----------------------------------- main ----------------------------------- #

if __name__ == "__main__":
    key = jax.random.PRNGKey(0)
    k_w, k_x = jax.random.split(key)

    # Small shapes consistent with the module: dim=32, n_heads=4 (head_dim=8),
    # n_kv_heads=2 (GQA n_rep=2), max_batch=2, max_seq=16; prefill batch=2,
    # seq=8, start_pos=0.
    dim, n_heads, n_kv_heads = 32, 4, 2
    batch, seq = 2, 8
    max_batch, max_seq = 2, 16
    start_pos = 0

    attn = SelfAttentionPallas(k_w, dim, n_heads, n_kv_heads, max_batch, max_seq)

    x = jax.random.normal(k_x, (batch, seq, dim), jnp.float32)
    cos, sin = precompute_freqs(attn.head_dim, seq, start_pos)

    y = attn(x, start_pos, cos, sin)
    jax.block_until_ready(y)
    assert y.shape == (batch, seq, dim)
    assert bool(jnp.all(jnp.isfinite(y)))
    print("KERNEL_OK")
</pallas_src>

<mosaic_0001>
module attributes {stable_mosaic.version = 11 : i64} {
  func.func @_matmul_kernel(%arg0: i32, %arg1: i32, %arg2: i32, %arg3: memref<16x32xf32, #tpu.memory_space<vmem>>, %arg4: memref<32x64xbf16, #tpu.memory_space<vmem>>, %arg5: memref<16x64xbf16, #tpu.memory_space<vmem>>, %arg6: memref<16x64xf32, #tpu.memory_space<vmem>>) attributes {dimension_semantics = [#tpu.dimension_semantics<parallel>, #tpu.dimension_semantics<parallel>, #tpu.dimension_semantics<arbitrary>], iteration_bounds = array<i64: 1, 1, 1>, scalar_prefetch = 0 : i64, scratch_operands = 1 : i64, tpu.core_type = #tpu.core_type<tc>, window_params = [{transform_indices = @transform_0, window_bounds = array<i64: 16, 32>}, {transform_indices = @transform_1, window_bounds = array<i64: 32, 64>}, {transform_indices = @transform_2, window_bounds = array<i64: 16, 64>}]} {
    %c0_i32 = arith.constant 0 : i32
    %0 = arith.cmpi eq, %arg2, %c0_i32 : i32
    %1 = arith.extui %0 : i1 to i32
    %c0_i32_0 = arith.constant 0 : i32
    %2 = arith.cmpi ne, %1, %c0_i32_0 : i32
    scf.if %2 {
      %cst_10 = arith.constant 0.000000e+00 : f32
      %13 = vector.broadcast %cst_10 : f32 to vector<16x64xf32>
      %c0_11 = arith.constant 0 : index
      %c0_12 = arith.constant 0 : index
      %14 = vector.load %arg6[%c0_11, %c0_12] : memref<16x64xf32, #tpu.memory_space<vmem>>, vector<16x64xf32>
      tpu.vector_store %arg6[%c0_11, %c0_12], %13 {strides = array<i32>} : memref<16x64xf32, #tpu.memory_space<vmem>>, vector<16x64xf32>,
    } else {
    }
    %c0 = arith.constant 0 : index
    %c0_1 = arith.constant 0 : index
    %3 = vector.load %arg6[%c0, %c0_1] : memref<16x64xf32, #tpu.memory_space<vmem>>, vector<16x64xf32>
    %c0_2 = arith.constant 0 : index
    %c0_3 = arith.constant 0 : index
    %4 = vector.load %arg3[%c0_2, %c0_3] : memref<16x32xf32, #tpu.memory_space<vmem>>, vector<16x32xf32>
    %5 = arith.truncf %4 : vector<16x32xf32> to vector<16x32xbf16>
    %c0_4 = arith.constant 0 : index
    %c0_5 = arith.constant 0 : index
    %6 = vector.load %arg4[%c0_4, %c0_5] : memref<32x64xbf16, #tpu.memory_space<vmem>>, vector<32x64xbf16>
    %cst = arith.constant dense<0.000000e+00> : vector<16x64xf32>
    %7 = tpu.matmul %5, %6, %cst {dimension_numbers = #tpu.dot_dimension_numbers<[1], [0], [0], [1], [0, 0, 1, 1], [], []>} : vector<16x32xbf16>, vector<32x64xbf16>, vector<16x64xf32> -> vector<16x64xf32>
    %8 = arith.addf %3, %7 : vector<16x64xf32>
    %c0_6 = arith.constant 0 : index
    %c0_7 = arith.constant 0 : index
    %9 = vector.load %arg6[%c0_6, %c0_7] : memref<16x64xf32, #tpu.memory_space<vmem>>, vector<16x64xf32>
    tpu.vector_store %arg6[%c0_6, %c0_7], %8 {strides = array<i32>} : memref<16x64xf32, #tpu.memory_space<vmem>>, vector<16x64xf32>,
    %c0_i32_8 = arith.constant 0 : i32
    %10 = arith.cmpi eq, %arg2, %c0_i32_8 : i32
    %11 = arith.extui %10 : i1 to i32
    %c0_i32_9 = arith.constant 0 : i32
    %12 = arith.cmpi ne, %11, %c0_i32_9 : i32
    scf.if %12 {
      %c0_10 = arith.constant 0 : index
      %c0_11 = arith.constant 0 : index
      %13 = vector.load %arg6[%c0_10, %c0_11] : memref<16x64xf32, #tpu.memory_space<vmem>>, vector<16x64xf32>
      %14 = arith.truncf %13 : vector<16x64xf32> to vector<16x64xbf16>
      %c0_12 = arith.constant 0 : index
      %c0_13 = arith.constant 0 : index
      %15 = vector.load %arg5[%c0_12, %c0_13] : memref<16x64xbf16, #tpu.memory_space<vmem>>, vector<16x64xbf16>
      tpu.vector_store %arg5[%c0_12, %c0_13], %14 {strides = array<i32>} : memref<16x64xbf16, #tpu.memory_space<vmem>>, vector<16x64xbf16>,
    } else {
    }
    return
  }
  func.func @transform_0(%arg0: i32, %arg1: i32, %arg2: i32) -> (i32, i32) {
    %c0_i32 = arith.constant 0 : i32
    return %arg0, %arg2 : i32, i32
  }
  func.func @transform_1(%arg0: i32, %arg1: i32, %arg2: i32) -> (i32, i32) {
    %c0_i32 = arith.constant 0 : i32
    return %arg2, %arg1 : i32, i32
  }
  func.func @transform_2(%arg0: i32, %arg1: i32, %arg2: i32) -> (i32, i32) {
    %c0_i32 = arith.constant 0 : i32
    return %arg0, %arg1 : i32, i32
  }
}

</mosaic_0001>

<llo_original>
// kernel: tpu_custom_call.1
$region0: #{tpu_custom_call.1}
  #allocation0 [shape = 'u32[]', space=smem, size = 0x4, offset = 0x4, fixed_abs, tag = 'smem constant byte address 0x4 - core index']
  #allocation1 [shape = 'u32[144,128]{1,0:T(1,128)}', space=vmem, size = 0x12000, scoped, tag = 'internal scratch']
  #allocation2 [shape = 'f32[16,64]{1,0:T(8,128)}', space=vmem, size = 0x2000, scoped, tag = 'scratch operand']
  %s0 = inlined_call_operand.hbm [shape: f32[16,32], index: 0, kind: input, shape index: {}]
  %s1 = inlined_call_operand.hbm [shape: bf16[32,64], index: 1, kind: input, shape index: {}]
  %s2 = inlined_call_operand.hbm [shape: bf16[16,64], index: 2, kind: output, shape index: {}]
  %s3 = sld [smem:[#allocation0]]
  $region34: #{tpu_custom_call.1} parent=0
    _
  %s5 = ssub.s32 1, %s3
  %s6 = scalar_select 0, %s5, %s3
  $region1: #{tpu_custom_call.1} parent=0
    #allocation3 [shape = 'u8[8192]{0}', space=vmem, size = 0x2000, scoped, tag = 'input window, operand 0, single buffered']
    #allocation4 [shape = 's32[1]{0}', space=sflag, size = 0x4, scoped, tag = 'scoped memory for tpu_custom_call.1']
    #allocation5 [shape = 's32[1]{0}', space=sflag, size = 0x4, scoped, tag = 'scoped memory for tpu_custom_call.1']
    #allocation6 [shape = 'u8[8192]{0}', space=vmem, size = 0x2000, scoped, tag = 'input window, operand 1, single buffered']
    #allocation7 [shape = 's32[1]{0}', space=sflag, size = 0x4, scoped, tag = 'scoped memory for tpu_custom_call.1']
    #allocation8 [shape = 'u8[4096]{0}', space=vmem, size = 0x1000, scoped, tag = 'output window, operand 0, single buffered']
    %7 = vsyncpa [#allocation4], 0
    %8 = vsyncpa [#allocation7], 0
    %9 = vsyncpa [#allocation5], 0
    // Predicated region
    $region2: #{tpu_custom_call.1} parent=1 // pred_check
      _
    $region3: #{tpu_custom_call.1} parent=1 // pred_check_branch
      %11 = sbr.rel (0) target = $region5
    $region4: #{tpu_custom_call.1} parent=1 // pred_region
      %s13 = ssub.s32 256, 256
      %14 = vsyncadd [#allocation4], %s13
      %s15 = sshll.u32 [#allocation3], 4
      %s16 = int_to_ptr.vmem [resolvable:$true] %s15
      %21 = dma.hbm_to_vmem [thread:$0]  %s0, 256, %s16, [#allocation4], 128, 128, 8
    $region5: #{tpu_custom_call.1} parent=1 // pred_fallthru
      _
    // Predicated region
    $region6: #{tpu_custom_call.1} parent=1 // pred_check
      _
    $region7: #{tpu_custom_call.1} parent=1 // pred_check_branch
      %23 = sbr.rel (0) target = $region9
    $region8: #{tpu_custom_call.1} parent=1 // pred_region
      %s25 = ssub.s32 256, 256
      %26 = vsyncadd [#allocation7], %s25
      %s27 = sshll.u32 [#allocation6], 4
      %s28 = int_to_ptr.vmem [resolvable:$true] %s27
      %33 = dma.hbm_to_vmem [thread:$0]  %s1, 256, %s28, [#allocation7], 64, 64, 4
    $region9: #{tpu_custom_call.1} parent=1 // pred_fallthru
      _
    // Predicated region
    $region10: #{tpu_custom_call.1} parent=1 // pred_check
      _
    $region11: #{tpu_custom_call.1} parent=1 // pred_check_branch
      %35 = sbr.rel (0) target = $region13
    $region12: #{tpu_custom_call.1} parent=1 // pred_region
      %36 = dma.done [#allocation4], 256
    $region13: #{tpu_custom_call.1} parent=1 // pred_fallthru
      _
    // Predicated region
    $region14: #{tpu_custom_call.1} parent=1 // pred_check
      _
    $region15: #{tpu_custom_call.1} parent=1 // pred_check_branch
      %38 = sbr.rel (0) target = $region17
    $region16: #{tpu_custom_call.1} parent=1 // pred_region
      %39 = dma.done [#allocation7], 256
    $region17: #{tpu_custom_call.1} parent=1 // pred_fallthru
      _
    %p41 = scmp.eq.s32.totalorder 0, 0
    // Predicated region
    $region18: #{tpu_custom_call.1} parent=1 // pred_check
      %p42 = pneg %p41
    $region19: #{tpu_custom_call.1} parent=1 // pred_check_branch
      %44 = sbr.rel (%p42) target = $region21
    $region20: #{tpu_custom_call.1} parent=1 // pred_region
      %vm45 = vcmask 523264
      %46 = vst.msk [vmem:[#allocation2] sm:$0xff] %vm45, 0.0
      %47 = vst.msk [vmem:[#allocation2 + $0x8] sm:$0xff] %vm45, 0.0
    $region21: #{tpu_custom_call.1} parent=1 // pred_fallthru
      _
    %v48 = vld [vmem:[#allocation2] sm:$0xff]
    %v49 = vld [vmem:[#allocation2 + $0x8] sm:$0xff]
    %v50 = vld [vmem:[#allocation3] sm:$0xff]
    %v51 = vld [vmem:[#allocation3 + $0x8] sm:$0xff]
    %v52 = vpack.c.bf16 %v51, %v50
    %v53 = vld [vmem:[#allocation6] sm:$0xf]
    %v54 = vld [vmem:[#allocation6 + $0x4] sm:$0xf]
    %v55 = vld [vmem:[#allocation6 + $0x8] sm:$0xf]
    %v56 = vld [vmem:[#allocation6 + $0xc] sm:$0xf]
    %v61 = vunpack.c.l.b16 %v53
    %v62 = vunpack.c.l.b16 %v54
    %v63 = vunpack.c.l.b16 %v55
    %v64 = vunpack.c.l.b16 %v56
    %v65 = vpack.c.b16 %v62, %v61
    %v66 = vpack.c.b16 %v64, %v63
    %vm69 = vcmask 261120
    %v71 = vsel %vm69, %v52, 0
    %73 = vmatprep.subr.bf16.mxu0 0
    %74 = vmatpush1.bf16.msra.mxu0 %v65
    %75 = vmatprep.subr.bf16.mxu0 0
    %76 = vmatpush1.bf16.msra.mxu0 %v66
    %77 = vmatprep.subr.bf16.mxu0 0
    %78 = vmatpush1.bf16.msra.mxu0 0
    %79 = vmatprep.subr.bf16.mxu0 0
    %80 = vmatpush1.bf16.msra.mxu0 0
    %81 = vmatprep.subr.bf16.mxu0 0
    %82 = vmatpush1.bf16.msra.mxu0 0
    %83 = vmatprep.subr.bf16.mxu0 0
    %84 = vmatpush1.bf16.msra.mxu0 0
    %85 = vmatprep.subr.bf16.mxu0 0
    %86 = vmatpush1.bf16.msra.mxu0 0
    %87 = vmatprep.subr.bf16.mxu0 0
    %88 = vmatpush1.bf16.msra.mxu0 0
    %89 = vmatprep.subr.bf16.mxu0 0
    %90 = vmatpush1.bf16.msra.mxu0 0
    %91 = vmatprep.subr.bf16.mxu0 0
    %92 = vmatpush1.bf16.msra.mxu0 0
    %93 = vmatprep.subr.bf16.mxu0 0
    %94 = vmatpush1.bf16.msra.mxu0 0
    %95 = vmatprep.subr.bf16.mxu0 0
    %96 = vmatpush1.bf16.msra.mxu0 0
    %97 = vmatprep.subr.bf16.mxu0 0
    %98 = vmatpush1.bf16.msra.mxu0 0
    %99 = vmatprep.subr.bf16.mxu0 0
    %100 = vmatpush1.bf16.msra.mxu0 0
    %101 = vmatprep.subr.bf16.mxu0 0
    %102 = vmatpush1.bf16.msra.mxu0 0
    %103 = vmatprep.subr.bf16.mxu0 0
    %104 = vmatpush1.bf16.msra.mxu0 0
    %105 = vmatprep.mubr.bf16.mxu0 0
    %106 = vmatmul.mubr.bf16.gmra.mrb[0].mxu0 %v71
    %v107 = vpop.f32.mrb[0].mxu0
    %v108 = vadd.f32 0.0, %v107
    %v109 = vpop.f32.mrb[0].mxu0
    %v110 = vpop.f32.mrb[0].mxu0
    %v111 = vadd.f32 0.0, %v110
    %v112 = vpop.f32.mrb[0].mxu0
    %113 = vdwg.mxu0
    %v114 = vadd.f32 %v48, %v108
    %v115 = vadd.f32 %v49, %v111
    %vm116 = vcmask 523264
    %117 = vst.msk [vmem:[#allocation2] sm:$0xff] %vm116, %v114
    %118 = vst.msk [vmem:[#allocation2 + $0x8] sm:$0xff] %vm116, %v115
    // Predicated region
    $region22: #{tpu_custom_call.1} parent=1 // pred_check
      %p119 = pneg %p41
    $region23: #{tpu_custom_call.1} parent=1 // pred_check_branch
      %121 = sbr.rel (%p119) target = $region25
    $region24: #{tpu_custom_call.1} parent=1 // pred_region
      %v122 = vld [vmem:[#allocation2] sm:$0xff]
      %v123 = vld [vmem:[#allocation2 + $0x8] sm:$0xff]
      %v124 = vpack.c.bf16 %v123, %v122
      %v126 = vunpack.c.l.b16 %v124
      %v127 = vunpack.c.h.b16 %v124
      %v128 = vpack.c.b16 %v126, %v126
      %v129 = vpack.c.b16 %v127, %v127
      %vm132 = vcmask 519168
      %133 = vst.msk [vmem:[#allocation8] sm:$0xf] %vm132, %v128
      %134 = vst.msk [vmem:[#allocation8 + $0x4] sm:$0xf] %vm132, %v129
    $region25: #{tpu_custom_call.1} parent=1 // pred_fallthru
      _
    // Predicated region
    $region26: #{tpu_custom_call.1} parent=1 // pred_check
      _
    $region27: #{tpu_custom_call.1} parent=1 // pred_check_branch
      %136 = sbr.rel (0) target = $region29
    $region28: #{tpu_custom_call.1} parent=1 // pred_region
      %s138 = ssub.s32 128, 128
      %139 = vsyncadd [#allocation5], %s138
      %s140 = sshll.u32 [#allocation8], 4
      %s141 = int_to_ptr.vmem [resolvable:$true] %s140
      %146 = dma.vmem_to_hbm [thread:$0]  %s141, 128, %s2, [#allocation5], 64, 64, 4
    $region29: #{tpu_custom_call.1} parent=1 // pred_fallthru
      _
    // Predicated region
    $region30: #{tpu_custom_call.1} parent=1 // pred_check
      _
    $region31: #{tpu_custom_call.1} parent=1 // pred_check_branch
      %148 = sbr.rel (0) target = $region33
    $region32: #{tpu_custom_call.1} parent=1 // pred_region
      %149 = dma.done [#allocation5], 128
    $region33: #{tpu_custom_call.1} parent=1 // pred_fallthru
      _
    %150 = vsyncpa [#allocation4], 1
    %151 = vsyncpa [#allocation7], 1
    %152 = vsyncpa [#allocation5], 1

</llo_original>
